<compile_context>
chip_gen: v5e
topology: v5e:2x2
jax: 0.10.0
libtpu: 0.0.40
codegen_flags: <defaults>
</compile_context>

<pallas_src>
import functools

import jax
import jax.numpy as jnp
from jax.experimental import pallas as pl
from jax.experimental.pallas import tpu as pltpu

LANES = 128


def _round_up(x, m):
    return ((x + m - 1) // m) * m


def critic_kernel(s_ref, a_ref, w1s_ref, w1a_ref, b1_ref, w2_ref, b2_ref,
                  w3_ref, b3_ref, q_ref):
    # fc1 with the concat fused: relu(state @ W1_s + action @ W1_a + b1)
    h1 = jnp.dot(s_ref[...], w1s_ref[...], preferred_element_type=jnp.float32)
    h1 = h1 + jnp.dot(a_ref[...], w1a_ref[...],
                      preferred_element_type=jnp.float32)
    h1 = jnp.maximum(h1 + b1_ref[...], 0.0)                            # [TB, H]
    # fc2 + relu
    h2 = jnp.dot(h1, w2_ref[...], preferred_element_type=jnp.float32) + b2_ref[...]
    h2 = jnp.maximum(h2, 0.0)                                          # [TB, H]
    # q_out: W3 is zero-padded to [H, 128] so the result tile is lane-dense;
    # only column 0 carries the Q-value. The scalar bias comes from SMEM.
    q = jnp.dot(h2, w3_ref[...], preferred_element_type=jnp.float32) + b3_ref[0, 0]
    q_ref[...] = q.astype(q_ref.dtype)                                 # [TB, 128]


def pack_params(params, state_size):
    """PyTorch-layout params -> kernel layout (split fc1, lane-pad q_out)."""
    w1, b1, w2, b2, w3, b3 = params
    w1_s = w1[:state_size]                                   # [S, H]
    w1_a = w1[state_size:]                                   # [A, H]
    h = w3.shape[0]
    w3_pad = jnp.zeros((h, LANES), w3.dtype).at[:, :1].set(w3)   # [H, 128]
    b3_s = b3.reshape(1, 1)                                      # SMEM scalar
    return (w1_s, w1_a, b1, w2, b2, w3_pad, b3_s)


@functools.partial(jax.jit, static_argnames=("tile_b",))
def critic_forward(state, action, kparams, *, tile_b=512):
    """state: [B, S], action: [B, A]; returns q: [B, 1]."""
    w1_s, w1_a, b1, w2, b2, w3_pad, b3_s = kparams
    B, S = state.shape
    A = action.shape[1]
    H = w1_s.shape[1]

    # Batch tile: a multiple of 8 sublanes, at most tile_b rows; pad the batch
    # so TB divides it (padded rows are discarded after the kernel).
    TB = min(tile_b, _round_up(B, 8))
    B_pad = _round_up(B, TB)
    if B_pad != B:
        pad = ((0, B_pad - B), (0, 0))
        state = jnp.pad(state, pad)
        action = jnp.pad(action, pad)
    grid = (B_pad // TB,)

    flops = 2 * B_pad * ((S + A) * H + H * H + H * LANES)
    bytes_accessed = 4 * (
        B_pad * (S + A)                                   # activations in
        + (S + A) * H + H + H * H + H + H * LANES + 1     # weights (resident)
        + B_pad * LANES)                                  # output slab

    q_pad = pl.pallas_call(
        critic_kernel,
        grid=grid,
        in_specs=[
            pl.BlockSpec((TB, S), lambda i: (i, 0)),        # state tile
            pl.BlockSpec((TB, A), lambda i: (i, 0)),        # action tile
            pl.BlockSpec((S, H), lambda i: (0, 0)),         # W1_s (resident)
            pl.BlockSpec((A, H), lambda i: (0, 0)),         # W1_a (resident)
            pl.BlockSpec((1, H), lambda i: (0, 0)),         # b1
            pl.BlockSpec((H, H), lambda i: (0, 0)),         # W2
            pl.BlockSpec((1, H), lambda i: (0, 0)),         # b2
            pl.BlockSpec((H, LANES), lambda i: (0, 0)),     # W3 (lane-padded)
            pl.BlockSpec(memory_space=pltpu.SMEM),          # b3 scalar
        ],
        out_specs=pl.BlockSpec((TB, LANES), lambda i: (i, 0)),
        out_shape=jax.ShapeDtypeStruct((B_pad, LANES), jnp.float32),
        compiler_params=pltpu.CompilerParams(
            dimension_semantics=("parallel",)),
        cost_estimate=pl.CostEstimate(
            flops=flops, transcendentals=0, bytes_accessed=bytes_accessed),
    )(state, action, w1_s, w1_a, b1, w2, b2, w3_pad, b3_s)

    return q_pad[:B, :1]


def init_params(key, state_size, action_size, hidden_size):
    """Mimics PyTorch nn.Linear default init (U[-1/sqrt(fan_in), 1/sqrt(fan_in)]).
    Weights are stored as [in, out] (already transposed for x @ W)."""
    def linear(key, fan_in, fan_out):
        kw, kb = jax.random.split(key)
        bound = 1.0 / jnp.sqrt(fan_in)
        w = jax.random.uniform(kw, (fan_in, fan_out), jnp.float32, -bound, bound)
        b = jax.random.uniform(kb, (1, fan_out), jnp.float32, -bound, bound)
        return w, b

    k1, k2, k3 = jax.random.split(key, 3)
    w1, b1 = linear(k1, state_size + action_size, hidden_size)
    w2, b2 = linear(k2, hidden_size, hidden_size)
    w3, b3 = linear(k3, hidden_size, 1)
    return (w1, b1, w2, b2, w3, b3)


def critic_reference(state, action, params):
    """Pure-JAX reference for correctness checking."""
    w1, b1, w2, b2, w3, b3 = params
    xu = jnp.concatenate([state, action], axis=-1)
    x = jnp.maximum(xu @ w1 + b1, 0.0)
    x = jnp.maximum(x @ w2 + b2, 0.0)
    return x @ w3 + b3


if __name__ == "__main__":
    # Critic(state_size=8, action_size=4, hidden_size=256)  (module default H)
    B, S, A, H = 2, 8, 4, 256

    key = jax.random.PRNGKey(0)
    k_params, k_state, k_action = jax.random.split(key, 3)

    params = init_params(k_params, S, A, H)
    kparams = pack_params(params, S)
    state = jax.random.normal(k_state, (B, S), jnp.float32)
    action = jax.random.normal(k_action, (B, A), jnp.float32)

    q = critic_forward(state, action, kparams)
    q = jax.block_until_ready(q)

    q_ref = critic_reference(state, action, params)
    assert q.shape == (B, 1), f"bad shape {q.shape}"
    err = float(jnp.max(jnp.abs(q - q_ref)))
    assert jnp.allclose(q, q_ref, atol=1e-3, rtol=1e-3), f"mismatch vs reference (max abs err {err})"

    print("KERNEL_OK")
</pallas_src>

<mosaic_0001>
module attributes {stable_mosaic.version = 11 : i64} {
  func.func @critic_kernel(%arg0: i32, %arg1: memref<8x8xf32, #tpu.memory_space<vmem>>, %arg2: memref<8x4xf32, #tpu.memory_space<vmem>>, %arg3: memref<8x256xf32, #tpu.memory_space<vmem>>, %arg4: memref<4x256xf32, #tpu.memory_space<vmem>>, %arg5: memref<1x256xf32, #tpu.memory_space<vmem>>, %arg6: memref<256x256xf32, #tpu.memory_space<vmem>>, %arg7: memref<1x256xf32, #tpu.memory_space<vmem>>, %arg8: memref<256x128xf32, #tpu.memory_space<vmem>>, %arg9: memref<1x1xf32, #tpu.memory_space<smem>>, %arg10: memref<8x128xf32, #tpu.memory_space<vmem>>) attributes {dimension_semantics = [#tpu.dimension_semantics<parallel>], iteration_bounds = array<i64: 1>, scalar_prefetch = 0 : i64, scratch_operands = 0 : i64, tpu.core_type = #tpu.core_type<tc>, window_params = [{transform_indices = @transform_0, window_bounds = array<i64: 8, 8>}, {transform_indices = @transform_1, window_bounds = array<i64: 8, 4>}, {pipeline_mode = #tpu.pipeline_mode<synchronous>, transform_indices = @transform_2, window_bounds = array<i64: 8, 256>}, {pipeline_mode = #tpu.pipeline_mode<synchronous>, transform_indices = @transform_3, window_bounds = array<i64: 4, 256>}, {pipeline_mode = #tpu.pipeline_mode<synchronous>, transform_indices = @transform_4, window_bounds = array<i64: 1, 256>}, {pipeline_mode = #tpu.pipeline_mode<synchronous>, transform_indices = @transform_5, window_bounds = array<i64: 256, 256>}, {pipeline_mode = #tpu.pipeline_mode<synchronous>, transform_indices = @transform_6, window_bounds = array<i64: 1, 256>}, {pipeline_mode = #tpu.pipeline_mode<synchronous>, transform_indices = @transform_7, window_bounds = array<i64: 256, 128>}, {transform_indices = @transform_8, window_bounds = array<i64: 1, 1>}, {transform_indices = @transform_9, window_bounds = array<i64: 8, 128>}]} {
    %c0 = arith.constant 0 : index
    %c0_0 = arith.constant 0 : index
    %0 = vector.load %arg1[%c0, %c0_0] : memref<8x8xf32, #tpu.memory_space<vmem>>, vector<8x8xf32>
    %c0_1 = arith.constant 0 : index
    %c0_2 = arith.constant 0 : index
    %1 = vector.load %arg3[%c0_1, %c0_2] : memref<8x256xf32, #tpu.memory_space<vmem>>, vector<8x256xf32>
    %cst = arith.constant dense<0.000000e+00> : vector<8x256xf32>
    %2 = tpu.matmul %0, %1, %cst {dimension_numbers = #tpu.dot_dimension_numbers<[1], [0], [0], [1], [0, 0, 1, 1], [], []>} : vector<8x8xf32>, vector<8x256xf32>, vector<8x256xf32> -> vector<8x256xf32>
    %c0_3 = arith.constant 0 : index
    %c0_4 = arith.constant 0 : index
    %3 = vector.load %arg2[%c0_3, %c0_4] : memref<8x4xf32, #tpu.memory_space<vmem>>, vector<8x4xf32>
    %c0_5 = arith.constant 0 : index
    %c0_6 = arith.constant 0 : index
    %4 = vector.load %arg4[%c0_5, %c0_6] : memref<4x256xf32, #tpu.memory_space<vmem>>, vector<4x256xf32>
    %cst_7 = arith.constant dense<0.000000e+00> : vector<8x256xf32>
    %5 = tpu.matmul %3, %4, %cst_7 {dimension_numbers = #tpu.dot_dimension_numbers<[1], [0], [0], [1], [0, 0, 1, 1], [], []>} : vector<8x4xf32>, vector<4x256xf32>, vector<8x256xf32> -> vector<8x256xf32>
    %6 = arith.addf %2, %5 : vector<8x256xf32>
    %c0_8 = arith.constant 0 : index
    %c0_9 = arith.constant 0 : index
    %7 = vector.load %arg5[%c0_8, %c0_9] : memref<1x256xf32, #tpu.memory_space<vmem>>, vector<1x256xf32>
    %8 = vector.broadcast %7 : vector<1x256xf32> to vector<8x256xf32>
    %9 = arith.addf %6, %8 : vector<8x256xf32>
    %cst_10 = arith.constant 0.000000e+00 : f32
    %10 = vector.broadcast %cst_10 : f32 to vector<8x256xf32>
    %11 = arith.maximumf %9, %10 : vector<8x256xf32>
    %c0_11 = arith.constant 0 : index
    %c0_12 = arith.constant 0 : index
    %12 = vector.load %arg6[%c0_11, %c0_12] : memref<256x256xf32, #tpu.memory_space<vmem>>, vector<256x256xf32>
    %cst_13 = arith.constant dense<0.000000e+00> : vector<8x256xf32>
    %13 = tpu.matmul %11, %12, %cst_13 {dimension_numbers = #tpu.dot_dimension_numbers<[1], [0], [0], [1], [0, 0, 1, 1], [], []>} : vector<8x256xf32>, vector<256x256xf32>, vector<8x256xf32> -> vector<8x256xf32>
    %c0_14 = arith.constant 0 : index
    %c0_15 = arith.constant 0 : index
    %14 = vector.load %arg7[%c0_14, %c0_15] : memref<1x256xf32, #tpu.memory_space<vmem>>, vector<1x256xf32>
    %15 = vector.broadcast %14 : vector<1x256xf32> to vector<8x256xf32>
    %16 = arith.addf %13, %15 : vector<8x256xf32>
    %cst_16 = arith.constant 0.000000e+00 : f32
    %17 = vector.broadcast %cst_16 : f32 to vector<8x256xf32>
    %18 = arith.maximumf %16, %17 : vector<8x256xf32>
    %c0_17 = arith.constant 0 : index
    %c0_18 = arith.constant 0 : index
    %19 = vector.load %arg8[%c0_17, %c0_18] : memref<256x128xf32, #tpu.memory_space<vmem>>, vector<256x128xf32>
    %cst_19 = arith.constant dense<0.000000e+00> : vector<8x128xf32>
    %20 = tpu.matmul %18, %19, %cst_19 {dimension_numbers = #tpu.dot_dimension_numbers<[1], [0], [0], [1], [0, 0, 1, 1], [], []>} : vector<8x256xf32>, vector<256x128xf32>, vector<8x128xf32> -> vector<8x128xf32>
    %c0_20 = arith.constant 0 : index
    %c0_21 = arith.constant 0 : index
    %21 = memref.load %arg9[%c0_20, %c0_21] : memref<1x1xf32, #tpu.memory_space<smem>>
    %22 = vector.broadcast %21 : f32 to vector<8x128xf32>
    %23 = arith.addf %20, %22 : vector<8x128xf32>
    %c0_22 = arith.constant 0 : index
    %c0_23 = arith.constant 0 : index
    %24 = vector.load %arg10[%c0_22, %c0_23] : memref<8x128xf32, #tpu.memory_space<vmem>>, vector<8x128xf32>
    tpu.vector_store %arg10[%c0_22, %c0_23], %23 {strides = array<i32>} : memref<8x128xf32, #tpu.memory_space<vmem>>, vector<8x128xf32>,
    return
  }
  func.func @transform_0(%arg0: i32) -> (i32, i32) {
    %c0_i32 = arith.constant 0 : i32
    %c0_i32_0 = arith.constant 0 : i32
    return %arg0, %c0_i32 : i32, i32
  }
  func.func @transform_1(%arg0: i32) -> (i32, i32) {
    %c0_i32 = arith.constant 0 : i32
    %c0_i32_0 = arith.constant 0 : i32
    return %arg0, %c0_i32 : i32, i32
  }
  func.func @transform_2(%arg0: i32) -> (i32, i32) {
    %c0_i32 = arith.constant 0 : i32
    %c0_i32_0 = arith.constant 0 : i32
    %c0_i32_1 = arith.constant 0 : i32
    return %c0_i32, %c0_i32_0 : i32, i32
  }
  func.func @transform_3(%arg0: i32) -> (i32, i32) {
    %c0_i32 = arith.constant 0 : i32
    %c0_i32_0 = arith.constant 0 : i32
    %c0_i32_1 = arith.constant 0 : i32
    return %c0_i32, %c0_i32_0 : i32, i32
  }
  func.func @transform_4(%arg0: i32) -> (i32, i32) {
    %c0_i32 = arith.constant 0 : i32
    %c0_i32_0 = arith.constant 0 : i32
    %c0_i32_1 = arith.constant 0 : i32
    return %c0_i32, %c0_i32_0 : i32, i32
  }
  func.func @transform_5(%arg0: i32) -> (i32, i32) {
    %c0_i32 = arith.constant 0 : i32
    %c0_i32_0 = arith.constant 0 : i32
    %c0_i32_1 = arith.constant 0 : i32
    return %c0_i32, %c0_i32_0 : i32, i32
  }
  func.func @transform_6(%arg0: i32) -> (i32, i32) {
    %c0_i32 = arith.constant 0 : i32
    %c0_i32_0 = arith.constant 0 : i32
    %c0_i32_1 = arith.constant 0 : i32
    return %c0_i32, %c0_i32_0 : i32, i32
  }
  func.func @transform_7(%arg0: i32) -> (i32, i32) {
    %c0_i32 = arith.constant 0 : i32
    %c0_i32_0 = arith.constant 0 : i32
    %c0_i32_1 = arith.constant 0 : i32
    return %c0_i32, %c0_i32_0 : i32, i32
  }
  func.func @transform_8(%arg0: i32) -> (i32, i32) {
    %c0_i32 = arith.constant 0 : i32
    %c0_i32_0 = arith.constant 0 : i32
    %c0_i32_1 = arith.constant 0 : i32
    return %c0_i32, %c0_i32_0 : i32, i32
  }
  func.func @transform_9(%arg0: i32) -> (i32, i32) {
    %c0_i32 = arith.constant 0 : i32
    %c0_i32_0 = arith.constant 0 : i32
    return %arg0, %c0_i32 : i32, i32
  }
}

</mosaic_0001>

<llo_original>
// kernel: critic_forward.1
$region0: #{critic_forward.1}
  #allocation0 [shape = 'u32[]', space=smem, size = 0x4, offset = 0x4, fixed_abs, tag = 'smem constant byte address 0x4 - core index']
  #allocation1 [shape = 'u32[72,128]{1,0:T(1,128)}', space=vmem, size = 0x9000, scoped, tag = 'internal scratch']
  #allocation2 [shape = 'f32[1,1]{1,0:T(1,128)S(6)}', space=smem, size = 0x200, scoped, tag = 'scoped memory for critic_forward.1']
  %s0 = inlined_call_operand.vmem [shape: f32[8,8], index: 0, kind: input, shape index: {}]
  %s1 = inlined_call_operand.vmem [shape: f32[8,4], index: 1, kind: input, shape index: {}]
  %s2 = inlined_call_operand.vmem [shape: f32[8,256], index: 2, kind: input, shape index: {}]
  %s3 = inlined_call_operand.vmem [shape: f32[4,256], index: 3, kind: input, shape index: {}]
  %s4 = inlined_call_operand.vmem [shape: f32[1,256], index: 4, kind: input, shape index: {}]
  %s5 = inlined_call_operand.hbm [shape: f32[256,256], index: 5, kind: input, shape index: {}]
  %s6 = inlined_call_operand.vmem [shape: f32[1,256], index: 6, kind: input, shape index: {}]
  %s7 = inlined_call_operand.hbm [shape: f32[256,128], index: 7, kind: input, shape index: {}]
  %s8 = inlined_call_operand.<no memory space> [shape: f32[1,1], index: 8, kind: input, shape index: {}]
  %s9 = inlined_call_operand.vmem [shape: f32[8,128], index: 9, kind: output, shape index: {}]
  %s10 = sld [smem:[#allocation0]]
  $region54: #{critic_forward.1} parent=0
    _
  %s12 = ssub.s32 1, %s10
  %s13 = scalar_select 0, %s12, %s10
  %14 = sst [smem:[#allocation2]] %s8
  $region1: #{critic_forward.1} parent=0
    #allocation3 [shape = 'u8[262144]{0}', space=vmem, size = 0x40000, scoped, tag = 'input window, operand 5, single buffered']
    #allocation4 [shape = 's32[1]{0}', space=sflag, size = 0x4, scoped, tag = 'scoped memory for critic_forward.1']
    #allocation5 [shape = 'u8[131072]{0}', space=vmem, size = 0x20000, scoped, tag = 'input window, operand 7, single buffered']
    #allocation6 [shape = 's32[1]{0}', space=sflag, size = 0x4, scoped, tag = 'scoped memory for critic_forward.1']
    %15 = vsyncpa [#allocation4], 0
    %16 = vsyncpa [#allocation6], 0
    // Predicated region
    $region2: #{critic_forward.1} parent=1 // pred_check
      _
    $region3: #{critic_forward.1} parent=1 // pred_check_branch
      %18 = sbr.rel (0) target = $region5
    $region4: #{critic_forward.1} parent=1 // pred_region
      _
    $region5: #{critic_forward.1} parent=1 // pred_fallthru
      _
    // Predicated region
    $region6: #{critic_forward.1} parent=1 // pred_check
      _
    $region7: #{critic_forward.1} parent=1 // pred_check_branch
      %20 = sbr.rel (0) target = $region9
    $region8: #{critic_forward.1} parent=1 // pred_region
      _
    $region9: #{critic_forward.1} parent=1 // pred_fallthru
      _
    // Predicated region
    $region10: #{critic_forward.1} parent=1 // pred_check
      _
    $region11: #{critic_forward.1} parent=1 // pred_check_branch
      %22 = sbr.rel (0) target = $region13
    $region12: #{critic_forward.1} parent=1 // pred_region
      _
    $region13: #{critic_forward.1} parent=1 // pred_fallthru
      _
    // Predicated region
    $region14: #{critic_forward.1} parent=1 // pred_check
      _
    $region15: #{critic_forward.1} parent=1 // pred_check_branch
      %24 = sbr.rel (0) target = $region17
    $region16: #{critic_forward.1} parent=1 // pred_region
      _
    $region17: #{critic_forward.1} parent=1 // pred_fallthru
      _
    // Predicated region
    $region18: #{critic_forward.1} parent=1 // pred_check
      _
    $region19: #{critic_forward.1} parent=1 // pred_check_branch
      %26 = sbr.rel (0) target = $region21
    $region20: #{critic_forward.1} parent=1 // pred_region
      _
    $region21: #{critic_forward.1} parent=1 // pred_fallthru
      _
    // Predicated region
    $region22: #{critic_forward.1} parent=1 // pred_check
      _
    $region23: #{critic_forward.1} parent=1 // pred_check_branch
      %28 = sbr.rel (0) target = $region25
    $region24: #{critic_forward.1} parent=1 // pred_region
      %30 = vsyncadd [#allocation4], 0
      %s31 = sshll.u32 %s5, 4
      %s32 = int_to_ptr.hbm [resolvable:$true] %s31
      %s33 = sshll.u32 [#allocation3], 4
      %s34 = int_to_ptr.vmem [resolvable:$true] %s33
      %39 = dma.hbm_to_vmem [thread:$0]  %s32, 8192, %s34, [#allocation4], 256, 256, 16
    $region25: #{critic_forward.1} parent=1 // pred_fallthru
      _
    // Predicated region
    $region26: #{critic_forward.1} parent=1 // pred_check
      _
    $region27: #{critic_forward.1} parent=1 // pred_check_branch
      %41 = sbr.rel (0) target = $region29
    $region28: #{critic_forward.1} parent=1 // pred_region
      _
    $region29: #{critic_forward.1} parent=1 // pred_fallthru
      _
    // Predicated region
    $region30: #{critic_forward.1} parent=1 // pred_check
      _
    $region31: #{critic_forward.1} parent=1 // pred_check_branch
      %43 = sbr.rel (0) target = $region33
    $region32: #{critic_forward.1} parent=1 // pred_region
      %45 = vsyncadd [#allocation6], 0
      %s46 = sshll.u32 %s7, 4
      %s47 = int_to_ptr.hbm [resolvable:$true] %s46
      %s48 = sshll.u32 [#allocation5], 4
      %s49 = int_to_ptr.vmem [resolvable:$true] %s48
      %54 = dma.hbm_to_vmem [thread:$0]  %s47, 4096, %s49, [#allocation6], 128, 128, 8
    $region33: #{critic_forward.1} parent=1 // pred_fallthru
      _
    // Predicated region
    $region34: #{critic_forward.1} parent=1 // pred_check
      _
    $region35: #{critic_forward.1} parent=1 // pred_check_branch
      %56 = sbr.rel (0) target = $region37
    $region36: #{critic_forward.1} parent=1 // pred_region
      _
    $region37: #{critic_forward.1} parent=1 // pred_fallthru
      _
    // Predicated region
    $region38: #{critic_forward.1} parent=1 // pred_check
      _
    $region39: #{critic_forward.1} parent=1 // pred_check_branch
      %58 = sbr.rel (0) target = $region41
    $region40: #{critic_forward.1} parent=1 // pred_region
      %60 = dma.done [#allocation4], 8192
    $region41: #{critic_forward.1} parent=1 // pred_fallthru
      _
    // Predicated region
    $region42: #{critic_forward.1} parent=1 // pred_check
      _
    $region43: #{critic_forward.1} parent=1 // pred_check_branch
      %62 = sbr.rel (0) target = $region45
    $region44: #{critic_forward.1} parent=1 // pred_region
      %64 = dma.done [#allocation6], 4096
    $region45: #{critic_forward.1} parent=1 // pred_fallthru
      _
    %v65 = vld [vmem:[%s0] sm:$0xff]
    %v66 = vld [vmem:[%s2] sm:$0xff]
    %v67 = vld [vmem:[%s2 + $0x8] sm:$0xff]
    %v68 = vld [vmem:[%s1] sm:$0xff]
    %v69 = vld [vmem:[%s3] sm:$0xff]
    %71 = vst [vmem:[#allocation1] ss:$2 sm:$0xff] %v69
    %v72 = vld.sshfl [vmem:[#allocation1] sm:$0xff pattern:$0x75316420]
    %v73 = vld.sshfl [vmem:[#allocation1 + $0x8] sm:$0xff pattern:$0x75316420]
    %vm74 = vcmask 31744
    %v76 = vsel %vm74, %v68, 0
    %vm78 = vcmask 1043456
    %v79 = vsel %vm78, %v72, 0
    %v81 = vsel %vm78, %v73, 0
    %83 = vmatpush.msra.mxu0 0.0
    %84 = vmatpush.msra.mxu0 0.0
    %85 = vmatpush.msra.mxu0 0.0
    %86 = vmatpush.msra.mxu0 0.0
    %87 = vmatpush.msra.mxu0 0.0
    %88 = vmatpush.msra.mxu0 0.0
    %89 = vmatpush.msra.mxu0 0.0
    %90 = vmatpush.msra.mxu0 0.0
    %91 = vmatpush.msra.mxu0 0.0
    %92 = vmatpush.msra.mxu0 0.0
    %93 = vmatpush.msra.mxu0 0.0
    %94 = vmatpush.msra.mxu0 0.0
    %95 = vmatpush.msra.mxu0 0.0
    %96 = vmatpush.msra.mxu0 0.0
    %97 = vmatpush.msra.mxu0 0.0
    %98 = vmatpush.msra.mxu0 %v79
    %99 = vmatmul.f32.gmra.mxu0 %v76
    %v100 = vpop.f32.mrf.mxu0
    %v101 = vadd.f32 0.0, %v100
    %102 = vdwg.mxu0
    %103 = vmatpush.msra.mxu0 0.0
    %104 = vmatpush.msra.mxu0 0.0
    %105 = vmatpush.msra.mxu0 0.0
    %106 = vmatpush.msra.mxu0 0.0
    %107 = vmatpush.msra.mxu0 0.0
    %108 = vmatpush.msra.mxu0 0.0
    %109 = vmatpush.msra.mxu0 0.0
    %110 = vmatpush.msra.mxu0 0.0
    %111 = vmatpush.msra.mxu0 0.0
    %112 = vmatpush.msra.mxu0 0.0
    %113 = vmatpush.msra.mxu0 0.0
    %114 = vmatpush.msra.mxu0 0.0
    %115 = vmatpush.msra.mxu0 0.0
    %116 = vmatpush.msra.mxu0 0.0
    %117 = vmatpush.msra.mxu0 0.0
    %118 = vmatpush.msra.mxu0 %v81
    %119 = vmatmul.f32.gmra.mxu0 %v76
    %v120 = vpop.f32.mrf.mxu0
    %v121 = vadd.f32 0.0, %v120
    %122 = vdwg.mxu0
    %vm123 = vcmask 64512
    %v125 = vsel %vm123, %v65, 0
    %127 = vmatpush.msra.mxu0 0.0
    %128 = vmatpush.msra.mxu0 0.0
    %129 = vmatpush.msra.mxu0 0.0
    %130 = vmatpush.msra.mxu0 0.0
    %131 = vmatpush.msra.mxu0 0.0
    %132 = vmatpush.msra.mxu0 0.0
    %133 = vmatpush.msra.mxu0 0.0
    %134 = vmatpush.msra.mxu0 0.0
    %135 = vmatpush.msra.mxu0 0.0
    %136 = vmatpush.msra.mxu0 0.0
    %137 = vmatpush.msra.mxu0 0.0
    %138 = vmatpush.msra.mxu0 0.0
    %139 = vmatpush.msra.mxu0 0.0
    %140 = vmatpush.msra.mxu0 0.0
    %141 = vmatpush.msra.mxu0 0.0
    %142 = vmatpush.msra.mxu0 %v66
    %143 = vmatmul.f32.gmra.mxu0 %v125
    %v144 = vpop.f32.mrf.mxu0
    %v145 = vadd.f32 %v101, %v144
    %146 = vdwg.mxu0
    %147 = vmatpush.msra.mxu0 0.0
    %148 = vmatpush.msra.mxu0 0.0
    %149 = vmatpush.msra.mxu0 0.0
    %150 = vmatpush.msra.mxu0 0.0
    %151 = vmatpush.msra.mxu0 0.0
    %152 = vmatpush.msra.mxu0 0.0
    %153 = vmatpush.msra.mxu0 0.0
    %154 = vmatpush.msra.mxu0 0.0
    %155 = vmatpush.msra.mxu0 0.0
    %156 = vmatpush.msra.mxu0 0.0
    %157 = vmatpush.msra.mxu0 0.0
    %158 = vmatpush.msra.mxu0 0.0
    %159 = vmatpush.msra.mxu0 0.0
    %160 = vmatpush.msra.mxu0 0.0
    %161 = vmatpush.msra.mxu0 0.0
    %162 = vmatpush.msra.mxu0 %v67
    %163 = vmatmul.f32.gmra.mxu0 %v125
    %v164 = vpop.f32.mrf.mxu0
    %v165 = vadd.f32 %v121, %v164
    %166 = vdwg.mxu0
    %v167 = vld [vmem:[%s4] sm:$0x3]
    %v169 = vperm.slane %v167, 0
    %v170 = vperm.slane %v167, 1
    %v173 = vadd.f32 %v145, %v169
    %v174 = vadd.f32 %v165, %v170
    %v175 = vmax.f32 %v173, 0.0
    %v176 = vmax.f32 %v174, 0.0
    %v177 = vld [vmem:[#allocation3] sm:$0xff]
    %v178 = vld [vmem:[#allocation3 + $0x8] sm:$0xff]
    %v179 = vld [vmem:[#allocation3 + $0x10] sm:$0xff]
    %v180 = vld [vmem:[#allocation3 + $0x18] sm:$0xff]
    %v181 = vld [vmem:[#allocation3 + $0x20] sm:$0xff]
    %v182 = vld [vmem:[#allocation3 + $0x28] sm:$0xff]
    %v183 = vld [vmem:[#allocation3 + $0x30] sm:$0xff]
    %v184 = vld [vmem:[#allocation3 + $0x38] sm:$0xff]
    %v185 = vld [vmem:[#allocation3 + $0x40] sm:$0xff]
    %v186 = vld [vmem:[#allocation3 + $0x48] sm:$0xff]
    %v187 = vld [vmem:[#allocation3 + $0x50] sm:$0xff]
    %v188 = vld [vmem:[#allocation3 + $0x58] sm:$0xff]
    %v189 = vld [vmem:[#allocation3 + $0x60] sm:$0xff]
    %v190 = vld [vmem:[#allocation3 + $0x68] sm:$0xff]
    %v191 = vld [vmem:[#allocation3 + $0x70] sm:$0xff]
    %v192 = vld [vmem:[#allocation3 + $0x78] sm:$0xff]
    %v193 = vld [vmem:[#allocation3 + $0x80] sm:$0xff]
    %v194 = vld [vmem:[#allocation3 + $0x88] sm:$0xff]
    %v195 = vld [vmem:[#allocation3 + $0x90] sm:$0xff]
    %v196 = vld [vmem:[#allocation3 + $0x98] sm:$0xff]
    %v197 = vld [vmem:[#allocation3 + $0xa0] sm:$0xff]
    %v198 = vld [vmem:[#allocation3 + $0xa8] sm:$0xff]
    %v199 = vld [vmem:[#allocation3 + $0xb0] sm:$0xff]
    %v200 = vld [vmem:[#allocation3 + $0xb8] sm:$0xff]
    %v201 = vld [vmem:[#allocation3 + $0xc0] sm:$0xff]
    %v202 = vld [vmem:[#allocation3 + $0xc8] sm:$0xff]
    %v203 = vld [vmem:[#allocation3 + $0xd0] sm:$0xff]
    %v204 = vld [vmem:[#allocation3 + $0xd8] sm:$0xff]
    %v205 = vld [vmem:[#allocation3 + $0xe0] sm:$0xff]
    %v206 = vld [vmem:[#allocation3 + $0xe8] sm:$0xff]
    %v207 = vld [vmem:[#allocation3 + $0xf0] sm:$0xff]
    %v208 = vld [vmem:[#allocation3 + $0xf8] sm:$0xff]
    %v209 = vld [vmem:[#allocation3 + $0x100] sm:$0xff]
    %v210 = vld [vmem:[#allocation3 + $0x108] sm:$0xff]
    %v211 = vld [vmem:[#allocation3 + $0x110] sm:$0xff]
    %v212 = vld [vmem:[#allocation3 + $0x118] sm:$0xff]
    %v213 = vld [vmem:[#allocation3 + $0x120] sm:$0xff]
    %v214 = vld [vmem:[#allocation3 + $0x128] sm:$0xff]
    %v215 = vld [vmem:[#allocation3 + $0x130] sm:$0xff]
    %v216 = vld [vmem:[#allocation3 + $0x138] sm:$0xff]
    %v217 = vld [vmem:[#allocation3 + $0x140] sm:$0xff]
    %v218 = vld [vmem:[#allocation3 + $0x148] sm:$0xff]
    %v219 = vld [vmem:[#allocation3 + $0x150] sm:$0xff]
    %v220 = vld [vmem:[#allocation3 + $0x158] sm:$0xff]
    %v221 = vld [vmem:[#allocation3 + $0x160] sm:$0xff]
    %v222 = vld [vmem:[#allocation3 + $0x168] sm:$0xff]
    %v223 = vld [vmem:[#allocation3 + $0x170] sm:$0xff]
    %v224 = vld [vmem:[#allocation3 + $0x178] sm:$0xff]
    %v225 = vld [vmem:[#allocation3 + $0x180] sm:$0xff]
    %v226 = vld [vmem:[#allocation3 + $0x188] sm:$0xff]
    %v227 = vld [vmem:[#allocation3 + $0x190] sm:$0xff]
    %v228 = vld [vmem:[#allocation3 + $0x198] sm:$0xff]
    %v229 = vld [vmem:[#allocation3 + $0x1a0] sm:$0xff]
    %v230 = vld [vmem:[#allocation3 + $0x1a8] sm:$0xff]
    %v231 = vld [vmem:[#allocation3 + $0x1b0] sm:$0xff]
    %v232 = vld [vmem:[#allocation3 + $0x1b8] sm:$0xff]
    %v233 = vld [vmem:[#allocation3 + $0x1c0] sm:$0xff]
    %v234 = vld [vmem:[#allocation3 + $0x1c8] sm:$0xff]
    %v235 = vld [vmem:[#allocation3 + $0x1d0] sm:$0xff]
    %v236 = vld [vmem:[#allocation3 + $0x1d8] sm:$0xff]
    %v237 = vld [vmem:[#allocation3 + $0x1e0] sm:$0xff]
    %v238 = vld [vmem:[#allocation3 + $0x1e8] sm:$0xff]
    %v239 = vld [vmem:[#allocation3 + $0x1f0] sm:$0xff]
    %v240 = vld [vmem:[#allocation3 + $0x1f8] sm:$0xff]
    %v241 = vld [vmem:[%s6] sm:$0x3]
    %v243 = vperm.slane %v241, 0
    %v244 = vperm.slane %v241, 1
    %247 = vmatpush.msra.mxu0 %v207
    %248 = vmatpush.msra.mxu0 %v205
    %249 = vmatpush.msra.mxu0 %v203
    %250 = vmatpush.msra.mxu0 %v201
    %251 = vmatpush.msra.mxu0 %v199
    %252 = vmatpush.msra.mxu0 %v197
    %253 = vmatpush.msra.mxu0 %v195
    %254 = vmatpush.msra.mxu0 %v193
    %255 = vmatpush.msra.mxu0 %v191
    %256 = vmatpush.msra.mxu0 %v189
    %257 = vmatpush.msra.mxu0 %v187
    %258 = vmatpush.msra.mxu0 %v185
    %259 = vmatpush.msra.mxu0 %v183
    %260 = vmatpush.msra.mxu0 %v181
    %261 = vmatpush.msra.mxu0 %v179
    %262 = vmatpush.msra.mxu0 %v177
    %263 = vmatmul.f32.gmra.mxu0 %v175
    %v264 = vpop.f32.mrf.mxu0
    %v265 = vadd.f32 %v243, %v264
    %266 = vdwg.mxu0
    %267 = vmatpush.msra.mxu0 %v239
    %268 = vmatpush.msra.mxu0 %v237
    %269 = vmatpush.msra.mxu0 %v235
    %270 = vmatpush.msra.mxu0 %v233
    %271 = vmatpush.msra.mxu0 %v231
    %272 = vmatpush.msra.mxu0 %v229
    %273 = vmatpush.msra.mxu0 %v227
    %274 = vmatpush.msra.mxu0 %v225
    %275 = vmatpush.msra.mxu0 %v223
    %276 = vmatpush.msra.mxu0 %v221
    %277 = vmatpush.msra.mxu0 %v219
    %278 = vmatpush.msra.mxu0 %v217
    %279 = vmatpush.msra.mxu0 %v215
    %280 = vmatpush.msra.mxu0 %v213
    %281 = vmatpush.msra.mxu0 %v211
    %282 = vmatpush.msra.mxu0 %v209
    %283 = vmatmul.f32.gmra.mxu0 %v176
    %v284 = vpop.f32.mrf.mxu0
    %v285 = vadd.f32 %v265, %v284
    %286 = vdwg.mxu0
    %287 = vmatpush.msra.mxu0 %v208
    %288 = vmatpush.msra.mxu0 %v206
    %289 = vmatpush.msra.mxu0 %v204
    %290 = vmatpush.msra.mxu0 %v202
    %291 = vmatpush.msra.mxu0 %v200
    %292 = vmatpush.msra.mxu0 %v198
    %293 = vmatpush.msra.mxu0 %v196
    %294 = vmatpush.msra.mxu0 %v194
    %295 = vmatpush.msra.mxu0 %v192
    %296 = vmatpush.msra.mxu0 %v190
    %297 = vmatpush.msra.mxu0 %v188
    %298 = vmatpush.msra.mxu0 %v186
    %299 = vmatpush.msra.mxu0 %v184
    %300 = vmatpush.msra.mxu0 %v182
    %301 = vmatpush.msra.mxu0 %v180
    %302 = vmatpush.msra.mxu0 %v178
    %303 = vmatmul.f32.gmra.mxu0 %v175
    %v304 = vpop.f32.mrf.mxu0
    %v305 = vadd.f32 %v244, %v304
    %306 = vdwg.mxu0
    %307 = vmatpush.msra.mxu0 %v240
    %308 = vmatpush.msra.mxu0 %v238
    %309 = vmatpush.msra.mxu0 %v236
    %310 = vmatpush.msra.mxu0 %v234
    %311 = vmatpush.msra.mxu0 %v232
    %312 = vmatpush.msra.mxu0 %v230
    %313 = vmatpush.msra.mxu0 %v228
    %314 = vmatpush.msra.mxu0 %v226
    %315 = vmatpush.msra.mxu0 %v224
    %316 = vmatpush.msra.mxu0 %v222
    %317 = vmatpush.msra.mxu0 %v220
    %318 = vmatpush.msra.mxu0 %v218
    %319 = vmatpush.msra.mxu0 %v216
    %320 = vmatpush.msra.mxu0 %v214
    %321 = vmatpush.msra.mxu0 %v212
    %322 = vmatpush.msra.mxu0 %v210
    %323 = vmatmul.f32.gmra.mxu0 %v176
    %v324 = vpop.f32.mrf.mxu0
    %v325 = vadd.f32 %v305, %v324
    %326 = vdwg.mxu0
    %v327 = vmax.f32 %v285, 0.0
    %v328 = vmax.f32 %v325, 0.0
    %v329 = vld [vmem:[#allocation5] sm:$0xff]
    %v330 = vld [vmem:[#allocation5 + $0x8] sm:$0xff]
    %v331 = vld [vmem:[#allocation5 + $0x10] sm:$0xff]
    %v332 = vld [vmem:[#allocation5 + $0x18] sm:$0xff]
    %v333 = vld [vmem:[#allocation5 + $0x20] sm:$0xff]
    %v334 = vld [vmem:[#allocation5 + $0x28] sm:$0xff]
    %v335 = vld [vmem:[#allocation5 + $0x30] sm:$0xff]
    %v336 = vld [vmem:[#allocation5 + $0x38] sm:$0xff]
    %v337 = vld [vmem:[#allocation5 + $0x40] sm:$0xff]
    %v338 = vld [vmem:[#allocation5 + $0x48] sm:$0xff]
    %v339 = vld [vmem:[#allocation5 + $0x50] sm:$0xff]
    %v340 = vld [vmem:[#allocation5 + $0x58] sm:$0xff]
    %v341 = vld [vmem:[#allocation5 + $0x60] sm:$0xff]
    %v342 = vld [vmem:[#allocation5 + $0x68] sm:$0xff]
    %v343 = vld [vmem:[#allocation5 + $0x70] sm:$0xff]
    %v344 = vld [vmem:[#allocation5 + $0x78] sm:$0xff]
    %v345 = vld [vmem:[#allocation5 + $0x80] sm:$0xff]
    %v346 = vld [vmem:[#allocation5 + $0x88] sm:$0xff]
    %v347 = vld [vmem:[#allocation5 + $0x90] sm:$0xff]
    %v348 = vld [vmem:[#allocation5 + $0x98] sm:$0xff]
    %v349 = vld [vmem:[#allocation5 + $0xa0] sm:$0xff]
    %v350 = vld [vmem:[#allocation5 + $0xa8] sm:$0xff]
    %v351 = vld [vmem:[#allocation5 + $0xb0] sm:$0xff]
    %v352 = vld [vmem:[#allocation5 + $0xb8] sm:$0xff]
    %v353 = vld [vmem:[#allocation5 + $0xc0] sm:$0xff]
    %v354 = vld [vmem:[#allocation5 + $0xc8] sm:$0xff]
    %v355 = vld [vmem:[#allocation5 + $0xd0] sm:$0xff]
    %v356 = vld [vmem:[#allocation5 + $0xd8] sm:$0xff]
    %v357 = vld [vmem:[#allocation5 + $0xe0] sm:$0xff]
    %v358 = vld [vmem:[#allocation5 + $0xe8] sm:$0xff]
    %v359 = vld [vmem:[#allocation5 + $0xf0] sm:$0xff]
    %v360 = vld [vmem:[#allocation5 + $0xf8] sm:$0xff]
    %s361 = sld [smem:[#allocation2]]
    %v362 = vstv %s361
    %363 = vmatpush.msra.mxu0 %v344
    %364 = vmatpush.msra.mxu0 %v343
    %365 = vmatpush.msra.mxu0 %v342
    %366 = vmatpush.msra.mxu0 %v341
    %367 = vmatpush.msra.mxu0 %v340
    %368 = vmatpush.msra.mxu0 %v339
    %369 = vmatpush.msra.mxu0 %v338
    %370 = vmatpush.msra.mxu0 %v337
    %371 = vmatpush.msra.mxu0 %v336
    %372 = vmatpush.msra.mxu0 %v335
    %373 = vmatpush.msra.mxu0 %v334
    %374 = vmatpush.msra.mxu0 %v333
    %375 = vmatpush.msra.mxu0 %v332
    %376 = vmatpush.msra.mxu0 %v331
    %377 = vmatpush.msra.mxu0 %v330
    %378 = vmatpush.msra.mxu0 %v329
    %379 = vmatmul.f32.gmra.mxu0 %v327
    %v380 = vpop.f32.mrf.mxu0
    %v381 = vadd.f32 %v362, %v380
    %382 = vdwg.mxu0
    %383 = vmatpush.msra.mxu0 %v360
    %384 = vmatpush.msra.mxu0 %v359
    %385 = vmatpush.msra.mxu0 %v358
    %386 = vmatpush.msra.mxu0 %v357
    %387 = vmatpush.msra.mxu0 %v356
    %388 = vmatpush.msra.mxu0 %v355
    %389 = vmatpush.msra.mxu0 %v354
    %390 = vmatpush.msra.mxu0 %v353
    %391 = vmatpush.msra.mxu0 %v352
    %392 = vmatpush.msra.mxu0 %v351
    %393 = vmatpush.msra.mxu0 %v350
    %394 = vmatpush.msra.mxu0 %v349
    %395 = vmatpush.msra.mxu0 %v348
    %396 = vmatpush.msra.mxu0 %v347
    %397 = vmatpush.msra.mxu0 %v346
    %398 = vmatpush.msra.mxu0 %v345
    %399 = vmatmul.f32.gmra.mxu0 %v328
    %v400 = vpop.f32.mrf.mxu0
    %v401 = vadd.f32 %v381, %v400
    %402 = vdwg.mxu0
    %403 = vst [vmem:[%s9] sm:$0xff] %v401
    // Predicated region
    $region46: #{critic_forward.1} parent=1 // pred_check
      _
    $region47: #{critic_forward.1} parent=1 // pred_check_branch
      %405 = sbr.rel (0) target = $region49
    $region48: #{critic_forward.1} parent=1 // pred_region
      _
    $region49: #{critic_forward.1} parent=1 // pred_fallthru
      _
    // Predicated region
    $region50: #{critic_forward.1} parent=1 // pred_check
      _
    $region51: #{critic_forward.1} parent=1 // pred_check_branch
      %407 = sbr.rel (0) target = $region53
    $region52: #{critic_forward.1} parent=1 // pred_region
      _
    $region53: #{critic_forward.1} parent=1 // pred_fallthru
      _
    %408 = vsyncpa [#allocation4], 1
    %409 = vsyncpa [#allocation6], 1

</llo_original>
